<compile_context>
chip_gen: v6e
topology: v6e:2x2x1
jax: 0.10.0
libtpu: 0.0.40
codegen_flags: <defaults>
</compile_context>

<pallas_src>
import functools

import jax
import jax.numpy as jnp
from jax.experimental import pallas as pl
from jax.experimental.pallas import tpu as pltpu


def _cnn_model_kernel(num_layers, kernel_size, word_emb_size,
                      h0_ref, cw_ref, cb_ref, uw_ref, ub_ref,
                      hw_ref, hb_ref, out_ref):
    Bt, S, C = h0_ref.shape
    H = uw_ref.shape[-1]
    KH = cw_ref.shape[1]
    E = word_emb_size
    pad = (kernel_size - 1) // 2
    R = Bt * S

    # activations kept flat (rows = Bt*S positions, lanes = channels)
    h_flat = h0_ref[...].reshape(R, C).astype(jnp.float32)

    for l in range(num_layers):
        # 'same' Conv1d as one fused matmul: zero-pad the sequence axis, take K
        # static shifted views, stack them along channels, then a single
        # (R, K*H) @ (K*H, H) MXU matmul.
        h3 = h_flat.reshape(Bt, S, H)
        if pad > 0:
            zpad = jnp.zeros((Bt, pad, H), jnp.float32)
            h_padded = jnp.concatenate([zpad, h3, zpad], axis=1)   # (Bt, S+2p, H)
        else:
            h_padded = h3
        taps = [h_padded[:, t:t + S, :] for t in range(kernel_size)]
        stacked = jnp.concatenate(taps, axis=-1).reshape(R, KH)    # (R, K*H)

        acc = jnp.dot(stacked, cw_ref[l], preferred_element_type=jnp.float32)
        acc = acc + cb_ref[l][None, :]
        tmp = jnp.tanh(acc)

        # update gate: Sigmoid(Linear(hidden, hidden))
        upd = jax.nn.sigmoid(
            jnp.dot(tmp, uw_ref[l], preferred_element_type=jnp.float32)
            + ub_ref[l][None, :])

        # gated residual
        h_flat = upd * tmp + (1.0 - upd) * h_flat

    # fused heads: one (R, H) @ (H, E+1) matmul; tanh on the first E lanes
    # (dense head), sigmoid on the last lane (gate head); single combined store.
    z = jnp.dot(h_flat, hw_ref[...], preferred_element_type=jnp.float32) + hb_ref[...]
    lane = jax.lax.broadcasted_iota(jnp.int32, z.shape, 1)
    head = jnp.where(lane < E, jnp.tanh(z), jax.nn.sigmoid(z))
    out_ref[...] = head.reshape(Bt, S, E + 1).astype(out_ref.dtype)


def _pick_batch_tile(B, S):
    """Largest divisor of B with Bt*S <= 1024 rows; prefer keeping >=2 grid
    steps (megacore on v7x) once Bt*S already reaches MXU-friendly size."""
    divs = [d for d in range(1, B + 1) if B % d == 0 and d * S <= 1024]
    if not divs:
        return 1
    bt = divs[-1]
    for d in reversed(divs):
        if B // d >= 2 and d * S >= 256:
            bt = d
            break
    return bt


def cnn_model_forward(params, X, lengths=None):
    """Pallas forward pass.  `lengths` is unused, matching the PyTorch forward."""
    del lengths
    B, S = X.shape
    emb = params["embedding"]          # (V, C)
    cw = params["conv_w"]              # (L, K, H, H)   (W_t stored as (C_in, H))
    cb = params["conv_b"]              # (L, H)
    uw = params["update_gate_w"]       # (L, H, H)      (stored transposed: x @ W)
    ub = params["update_gate_b"]       # (L, H)
    dw = params["dense_w"]             # (H, E)
    db = params["dense_b"]             # (1, E)
    gw = params["gate_w"]              # (H, 1)
    gb = params["gate_b"]              # (1, 1)

    L, K, H, _ = cw.shape
    E = dw.shape[1]
    V, C = emb.shape
    assert C == H, "gated residual at layer 0 requires char_emb_size == hidden_size"
    assert K % 2 == 1, "'same' residual conv requires odd kernel_size"

    # Embedding lookup outside the kernel (HBM-side gather; removes one-hot work).
    h0 = emb[X.astype(jnp.int32)].astype(jnp.float32)     # (B, S, C)

    # Fuse K conv taps: (L, K, H, H) -> (L, K*H, H) so each layer is one matmul.
    cw_cat = cw.reshape(L, K * H, H)
    # Fuse gate head into dense head: one (H, E+1) matmul + one combined store.
    hw = jnp.concatenate([dw, gw], axis=1)                # (H, E+1)
    hb = jnp.concatenate([db, gb], axis=1)                # (1, E+1)

    Bt = _pick_batch_tile(B, S)
    kernel = functools.partial(_cnn_model_kernel, L, K, E)

    out = pl.pallas_call(
        kernel,
        out_shape=jax.ShapeDtypeStruct((B, S, E + 1), jnp.float32),
        grid_spec=pltpu.PrefetchScalarGridSpec(
            num_scalar_prefetch=0,
            grid=(B // Bt,),
            in_specs=[
                pl.BlockSpec((Bt, S, C), lambda b: (b, 0, 0)),       # activations
                pl.BlockSpec((L, K * H, H), lambda b: (0, 0, 0)),    # fused conv W
                pl.BlockSpec((L, H), lambda b: (0, 0)),              # conv biases
                pl.BlockSpec((L, H, H), lambda b: (0, 0, 0)),        # update gate W
                pl.BlockSpec((L, H), lambda b: (0, 0)),              # update gate b
                pl.BlockSpec((H, E + 1), lambda b: (0, 0)),          # fused head W
                pl.BlockSpec((1, E + 1), lambda b: (0, 0)),          # fused head b
            ],
            out_specs=pl.BlockSpec((Bt, S, E + 1), lambda b: (b, 0, 0)),
        ),
        compiler_params=pltpu.CompilerParams(
            dimension_semantics=("parallel",),
            vmem_limit_bytes=48 * 1024 * 1024,   # safe on v5e/v6e/v7x (64 MiB phys)
        ),
    )(h0, cw_cat, cb, uw, ub, hw, hb)

    dense_out = out[..., :E]        # (B, S, E)
    gate_out = out[..., E]          # (B, S)
    return dense_out, gate_out


def cnn_model_forward_ref(params, X):
    """Pure-JAX reference of the PyTorch forward (for verification)."""
    h = params["embedding"][X]                                   # (B, S, C)
    L, K, H, _ = params["conv_w"].shape
    pad = (K - 1) // 2
    B, S, _ = h.shape
    for l in range(L):
        xp = jnp.pad(h, ((0, 0), (pad, pad), (0, 0)))
        acc = jnp.broadcast_to(params["conv_b"][l], (B, S, H)).astype(jnp.float32)
        for t in range(K):
            acc = acc + jnp.einsum("bsc,ch->bsh", xp[:, t:t + S, :],
                                   params["conv_w"][l, t])
        tmp = jnp.tanh(acc)
        upd = jax.nn.sigmoid(jnp.einsum("bsh,hk->bsk", tmp,
                                        params["update_gate_w"][l])
                             + params["update_gate_b"][l])
        h = upd * tmp + (1.0 - upd) * h
    dense = jnp.tanh(h @ params["dense_w"] + params["dense_b"])
    gate = jax.nn.sigmoid(h @ params["gate_w"] + params["gate_b"])
    return dense, gate[..., 0]


if __name__ == "__main__":
    # Small shapes consistent with the module.
    B, S = 2, 16
    num_tokens = 50
    char_emb_size = 32
    hidden_size = 32          # must equal char_emb_size (layer-0 gated residual)
    word_emb_size = 32
    kernel_size = 3
    num_layers = 2

    keys = jax.random.split(jax.random.PRNGKey(0), 10)
    params = {
        "embedding": jax.random.normal(keys[0], (num_tokens, char_emb_size), jnp.float32),
        "conv_w": 0.2 * jax.random.normal(
            keys[1], (num_layers, kernel_size, hidden_size, hidden_size), jnp.float32),
        "conv_b": 0.1 * jax.random.normal(keys[2], (num_layers, hidden_size), jnp.float32),
        "update_gate_w": 0.2 * jax.random.normal(
            keys[3], (num_layers, hidden_size, hidden_size), jnp.float32),
        "update_gate_b": 0.1 * jax.random.normal(keys[4], (num_layers, hidden_size), jnp.float32),
        "dense_w": 0.2 * jax.random.normal(keys[5], (hidden_size, word_emb_size), jnp.float32),
        "dense_b": 0.1 * jax.random.normal(keys[6], (1, word_emb_size), jnp.float32),
        "gate_w": 0.2 * jax.random.normal(keys[7], (hidden_size, 1), jnp.float32),
        "gate_b": 0.1 * jax.random.normal(keys[8], (1, 1), jnp.float32),
    }

    X = jax.random.randint(keys[9], (B, S), 0, num_tokens, dtype=jnp.int32)
    lengths = jnp.full((B,), S, jnp.int32)   # accepted but unused, as in PyTorch forward

    dense_out, gate_out = cnn_model_forward(params, X, lengths)
    jax.block_until_ready((dense_out, gate_out))

    dense_ref, gate_ref = cnn_model_forward_ref(params, X)
    assert dense_out.shape == (B, S, word_emb_size)
    assert gate_out.shape == (B, S)
    assert jnp.allclose(dense_out, dense_ref, atol=1e-2, rtol=1e-2)
    assert jnp.allclose(gate_out, gate_ref, atol=1e-2, rtol=1e-2)

    # TODO(synk): predict_embeddings (host-side, data-dependent Python packing loop)
    # is intentionally not implemented as a kernel.
    print("KERNEL_OK")
</pallas_src>

<mosaic_0001>
module attributes {stable_mosaic.version = 11 : i64} {
  func.func @_cnn_model_kernel(%arg0: i32, %arg1: memref<2x16x32xf32, #tpu.memory_space<vmem>>, %arg2: memref<2x96x32xf32, #tpu.memory_space<vmem>>, %arg3: memref<2x32xf32, #tpu.memory_space<vmem>>, %arg4: memref<2x32x32xf32, #tpu.memory_space<vmem>>, %arg5: memref<2x32xf32, #tpu.memory_space<vmem>>, %arg6: memref<32x33xf32, #tpu.memory_space<vmem>>, %arg7: memref<1x33xf32, #tpu.memory_space<vmem>>, %arg8: memref<2x16x33xf32, #tpu.memory_space<vmem>>) attributes {dimension_semantics = [#tpu.dimension_semantics<parallel>], iteration_bounds = array<i64: 1>, scalar_prefetch = 0 : i64, scratch_operands = 0 : i64, tpu.core_type = #tpu.core_type<tc>, window_params = [{transform_indices = @transform_0, window_bounds = array<i64: 2, 16, 32>}, {pipeline_mode = #tpu.pipeline_mode<synchronous>, transform_indices = @transform_1, window_bounds = array<i64: 2, 96, 32>}, {pipeline_mode = #tpu.pipeline_mode<synchronous>, transform_indices = @transform_2, window_bounds = array<i64: 2, 32>}, {pipeline_mode = #tpu.pipeline_mode<synchronous>, transform_indices = @transform_3, window_bounds = array<i64: 2, 32, 32>}, {pipeline_mode = #tpu.pipeline_mode<synchronous>, transform_indices = @transform_4, window_bounds = array<i64: 2, 32>}, {pipeline_mode = #tpu.pipeline_mode<synchronous>, transform_indices = @transform_5, window_bounds = array<i64: 32, 33>}, {pipeline_mode = #tpu.pipeline_mode<synchronous>, transform_indices = @transform_6, window_bounds = array<i64: 1, 33>}, {transform_indices = @transform_7, window_bounds = array<i64: 2, 16, 33>}]} {
    %c0 = arith.constant 0 : index
    %c0_0 = arith.constant 0 : index
    %c0_1 = arith.constant 0 : index
    %0 = vector.load %arg1[%c0, %c0_0, %c0_1] : memref<2x16x32xf32, #tpu.memory_space<vmem>>, vector<2x16x32xf32>
    %1 = vector.shape_cast %0 : vector<2x16x32xf32> to vector<32x32xf32>
    %2 = vector.shape_cast %1 : vector<32x32xf32> to vector<2x16x32xf32>
    %cst = arith.constant 0.000000e+00 : f32
    %3 = vector.broadcast %cst : f32 to vector<2x1x32xf32>
    %4 = tpu.concatenate %3, %2, %3 in 1 : vector<2x1x32xf32>, vector<2x16x32xf32>, vector<2x1x32xf32> -> vector<2x18x32xf32>
    %5 = vector.extract_strided_slice %4 {offsets = [0, 0, 0], sizes = [2, 16, 32], strides = [1, 1, 1]} : vector<2x18x32xf32> to vector<2x16x32xf32>
    %6 = vector.extract_strided_slice %4 {offsets = [0, 1, 0], sizes = [2, 16, 32], strides = [1, 1, 1]} : vector<2x18x32xf32> to vector<2x16x32xf32>
    %7 = vector.extract_strided_slice %4 {offsets = [0, 2, 0], sizes = [2, 16, 32], strides = [1, 1, 1]} : vector<2x18x32xf32> to vector<2x16x32xf32>
    %8 = tpu.concatenate %5, %6, %7 in 2 : vector<2x16x32xf32>, vector<2x16x32xf32>, vector<2x16x32xf32> -> vector<2x16x96xf32>
    %9 = vector.shape_cast %8 : vector<2x16x96xf32> to vector<32x96xf32>
    %c0_2 = arith.constant 0 : index
    %c0_3 = arith.constant 0 : index
    %c0_4 = arith.constant 0 : index
    %10 = vector.load %arg2[%c0_2, %c0_3, %c0_4] : memref<2x96x32xf32, #tpu.memory_space<vmem>>, vector<1x96x32xf32>
    %11 = vector.shape_cast %10 : vector<1x96x32xf32> to vector<96x32xf32>
    %cst_5 = arith.constant dense<0.000000e+00> : vector<32x32xf32>
    %12 = tpu.matmul %9, %11, %cst_5 {dimension_numbers = #tpu.dot_dimension_numbers<[1], [0], [0], [1], [0, 0, 1, 1], [], []>} : vector<32x96xf32>, vector<96x32xf32>, vector<32x32xf32> -> vector<32x32xf32>
    %c0_6 = arith.constant 0 : index
    %c0_7 = arith.constant 0 : index
    %13 = vector.load %arg3[%c0_6, %c0_7] : memref<2x32xf32, #tpu.memory_space<vmem>>, vector<1x32xf32>
    %14 = vector.shape_cast %13 : vector<1x32xf32> to vector<32xf32>
    %15 = vector.shape_cast %14 : vector<32xf32> to vector<1x32xf32>
    %16 = vector.broadcast %15 : vector<1x32xf32> to vector<32x32xf32>
    %17 = arith.addf %12, %16 : vector<32x32xf32>
    %18 = math.tanh %17 : vector<32x32xf32>
    %c0_8 = arith.constant 0 : index
    %c0_9 = arith.constant 0 : index
    %c0_10 = arith.constant 0 : index
    %19 = vector.load %arg4[%c0_8, %c0_9, %c0_10] : memref<2x32x32xf32, #tpu.memory_space<vmem>>, vector<1x32x32xf32>
    %20 = vector.shape_cast %19 : vector<1x32x32xf32> to vector<32x32xf32>
    %cst_11 = arith.constant dense<0.000000e+00> : vector<32x32xf32>
    %21 = tpu.matmul %18, %20, %cst_11 {dimension_numbers = #tpu.dot_dimension_numbers<[1], [0], [0], [1], [0, 0, 1, 1], [], []>} : vector<32x32xf32>, vector<32x32xf32>, vector<32x32xf32> -> vector<32x32xf32>
    %c0_12 = arith.constant 0 : index
    %c0_13 = arith.constant 0 : index
    %22 = vector.load %arg5[%c0_12, %c0_13] : memref<2x32xf32, #tpu.memory_space<vmem>>, vector<1x32xf32>
    %23 = vector.shape_cast %22 : vector<1x32xf32> to vector<32xf32>
    %24 = vector.shape_cast %23 : vector<32xf32> to vector<1x32xf32>
    %25 = vector.broadcast %24 : vector<1x32xf32> to vector<32x32xf32>
    %26 = arith.addf %21, %25 : vector<32x32xf32>
    %27 = arith.negf %26 : vector<32x32xf32>
    %28 = math.exp %27 : vector<32x32xf32>
    %cst_14 = arith.constant 1.000000e+00 : f32
    %29 = vector.broadcast %cst_14 : f32 to vector<32x32xf32>
    %30 = arith.addf %29, %28 : vector<32x32xf32>
    %31 = arith.divf %29, %30 : vector<32x32xf32>
    %32 = arith.mulf %31, %18 : vector<32x32xf32>
    %cst_15 = arith.constant 1.000000e+00 : f32
    %33 = vector.broadcast %cst_15 : f32 to vector<32x32xf32>
    %34 = arith.subf %33, %31 : vector<32x32xf32>
    %35 = arith.mulf %34, %1 : vector<32x32xf32>
    %36 = arith.addf %32, %35 : vector<32x32xf32>
    %37 = vector.shape_cast %36 : vector<32x32xf32> to vector<2x16x32xf32>
    %cst_16 = arith.constant 0.000000e+00 : f32
    %38 = vector.broadcast %cst_16 : f32 to vector<2x1x32xf32>
    %39 = tpu.concatenate %38, %37, %38 in 1 : vector<2x1x32xf32>, vector<2x16x32xf32>, vector<2x1x32xf32> -> vector<2x18x32xf32>
    %40 = vector.extract_strided_slice %39 {offsets = [0, 0, 0], sizes = [2, 16, 32], strides = [1, 1, 1]} : vector<2x18x32xf32> to vector<2x16x32xf32>
    %41 = vector.extract_strided_slice %39 {offsets = [0, 1, 0], sizes = [2, 16, 32], strides = [1, 1, 1]} : vector<2x18x32xf32> to vector<2x16x32xf32>
    %42 = vector.extract_strided_slice %39 {offsets = [0, 2, 0], sizes = [2, 16, 32], strides = [1, 1, 1]} : vector<2x18x32xf32> to vector<2x16x32xf32>
    %43 = tpu.concatenate %40, %41, %42 in 2 : vector<2x16x32xf32>, vector<2x16x32xf32>, vector<2x16x32xf32> -> vector<2x16x96xf32>
    %44 = vector.shape_cast %43 : vector<2x16x96xf32> to vector<32x96xf32>
    %c1 = arith.constant 1 : index
    %c0_17 = arith.constant 0 : index
    %c0_18 = arith.constant 0 : index
    %45 = vector.load %arg2[%c1, %c0_17, %c0_18] : memref<2x96x32xf32, #tpu.memory_space<vmem>>, vector<1x96x32xf32>
    %46 = vector.shape_cast %45 : vector<1x96x32xf32> to vector<96x32xf32>
    %cst_19 = arith.constant dense<0.000000e+00> : vector<32x32xf32>
    %47 = tpu.matmul %44, %46, %cst_19 {dimension_numbers = #tpu.dot_dimension_numbers<[1], [0], [0], [1], [0, 0, 1, 1], [], []>} : vector<32x96xf32>, vector<96x32xf32>, vector<32x32xf32> -> vector<32x32xf32>
    %c1_20 = arith.constant 1 : index
    %c0_21 = arith.constant 0 : index
    %48 = vector.load %arg3[%c1_20, %c0_21] : memref<2x32xf32, #tpu.memory_space<vmem>>, vector<1x32xf32>
    %49 = vector.shape_cast %48 : vector<1x32xf32> to vector<32xf32>
    %50 = vector.shape_cast %49 : vector<32xf32> to vector<1x32xf32>
    %51 = vector.broadcast %50 : vector<1x32xf32> to vector<32x32xf32>
    %52 = arith.addf %47, %51 : vector<32x32xf32>
    %53 = math.tanh %52 : vector<32x32xf32>
    %c1_22 = arith.constant 1 : index
    %c0_23 = arith.constant 0 : index
    %c0_24 = arith.constant 0 : index
    %54 = vector.load %arg4[%c1_22, %c0_23, %c0_24] : memref<2x32x32xf32, #tpu.memory_space<vmem>>, vector<1x32x32xf32>
    %55 = vector.shape_cast %54 : vector<1x32x32xf32> to vector<32x32xf32>
    %cst_25 = arith.constant dense<0.000000e+00> : vector<32x32xf32>
    %56 = tpu.matmul %53, %55, %cst_25 {dimension_numbers = #tpu.dot_dimension_numbers<[1], [0], [0], [1], [0, 0, 1, 1], [], []>} : vector<32x32xf32>, vector<32x32xf32>, vector<32x32xf32> -> vector<32x32xf32>
    %c1_26 = arith.constant 1 : index
    %c0_27 = arith.constant 0 : index
    %57 = vector.load %arg5[%c1_26, %c0_27] : memref<2x32xf32, #tpu.memory_space<vmem>>, vector<1x32xf32>
    %58 = vector.shape_cast %57 : vector<1x32xf32> to vector<32xf32>
    %59 = vector.shape_cast %58 : vector<32xf32> to vector<1x32xf32>
    %60 = vector.broadcast %59 : vector<1x32xf32> to vector<32x32xf32>
    %61 = arith.addf %56, %60 : vector<32x32xf32>
    %62 = arith.negf %61 : vector<32x32xf32>
    %63 = math.exp %62 : vector<32x32xf32>
    %cst_28 = arith.constant 1.000000e+00 : f32
    %64 = vector.broadcast %cst_28 : f32 to vector<32x32xf32>
    %65 = arith.addf %64, %63 : vector<32x32xf32>
    %66 = arith.divf %64, %65 : vector<32x32xf32>
    %67 = arith.mulf %66, %53 : vector<32x32xf32>
    %cst_29 = arith.constant 1.000000e+00 : f32
    %68 = vector.broadcast %cst_29 : f32 to vector<32x32xf32>
    %69 = arith.subf %68, %66 : vector<32x32xf32>
    %70 = arith.mulf %69, %36 : vector<32x32xf32>
    %71 = arith.addf %67, %70 : vector<32x32xf32>
    %c0_30 = arith.constant 0 : index
    %c0_31 = arith.constant 0 : index
    %72 = vector.load %arg6[%c0_30, %c0_31] : memref<32x33xf32, #tpu.memory_space<vmem>>, vector<32x33xf32>
    %cst_32 = arith.constant dense<0.000000e+00> : vector<32x33xf32>
    %73 = tpu.matmul %71, %72, %cst_32 {dimension_numbers = #tpu.dot_dimension_numbers<[1], [0], [0], [1], [0, 0, 1, 1], [], []>} : vector<32x32xf32>, vector<32x33xf32>, vector<32x33xf32> -> vector<32x33xf32>
    %c0_33 = arith.constant 0 : index
    %c0_34 = arith.constant 0 : index
    %74 = vector.load %arg7[%c0_33, %c0_34] : memref<1x33xf32, #tpu.memory_space<vmem>>, vector<1x33xf32>
    %75 = vector.broadcast %74 : vector<1x33xf32> to vector<32x33xf32>
    %76 = arith.addf %73, %75 : vector<32x33xf32>
    %77 = tpu.iota {dimensions = array<i32: 1>} : vector<32x33xi32>
    %c32_i32 = arith.constant 32 : i32
    %78 = vector.broadcast %c32_i32 : i32 to vector<32x33xi32>
    %79 = arith.cmpi slt, %77, %78 : vector<32x33xi32>
    %80 = math.tanh %76 : vector<32x33xf32>
    %81 = arith.negf %76 : vector<32x33xf32>
    %82 = math.exp %81 : vector<32x33xf32>
    %cst_35 = arith.constant 1.000000e+00 : f32
    %83 = vector.broadcast %cst_35 : f32 to vector<32x33xf32>
    %84 = arith.addf %83, %82 : vector<32x33xf32>
    %85 = arith.divf %83, %84 : vector<32x33xf32>
    %86 = arith.select %79, %80, %85 : vector<32x33xi1>, vector<32x33xf32>
    %87 = vector.shape_cast %86 : vector<32x33xf32> to vector<2x16x33xf32>
    %c0_36 = arith.constant 0 : index
    %c0_37 = arith.constant 0 : index
    %c0_38 = arith.constant 0 : index
    %88 = vector.load %arg8[%c0_36, %c0_37, %c0_38] : memref<2x16x33xf32, #tpu.memory_space<vmem>>, vector<2x16x33xf32>
    tpu.vector_store %arg8[%c0_36, %c0_37, %c0_38], %87 {strides = array<i32>} : memref<2x16x33xf32, #tpu.memory_space<vmem>>, vector<2x16x33xf32>,
    return
  }
  func.func @transform_0(%arg0: i32) -> (i32, i32, i32) {
    %c0_i32 = arith.constant 0 : i32
    %c0_i32_0 = arith.constant 0 : i32
    %c0_i32_1 = arith.constant 0 : i32
    return %arg0, %c0_i32, %c0_i32_0 : i32, i32, i32
  }
  func.func @transform_1(%arg0: i32) -> (i32, i32, i32) {
    %c0_i32 = arith.constant 0 : i32
    %c0_i32_0 = arith.constant 0 : i32
    %c0_i32_1 = arith.constant 0 : i32
    %c0_i32_2 = arith.constant 0 : i32
    return %c0_i32, %c0_i32_0, %c0_i32_1 : i32, i32, i32
  }
  func.func @transform_2(%arg0: i32) -> (i32, i32) {
    %c0_i32 = arith.constant 0 : i32
    %c0_i32_0 = arith.constant 0 : i32
    %c0_i32_1 = arith.constant 0 : i32
    return %c0_i32, %c0_i32_0 : i32, i32
  }
  func.func @transform_3(%arg0: i32) -> (i32, i32, i32) {
    %c0_i32 = arith.constant 0 : i32
    %c0_i32_0 = arith.constant 0 : i32
    %c0_i32_1 = arith.constant 0 : i32
    %c0_i32_2 = arith.constant 0 : i32
    return %c0_i32, %c0_i32_0, %c0_i32_1 : i32, i32, i32
  }
  func.func @transform_4(%arg0: i32) -> (i32, i32) {
    %c0_i32 = arith.constant 0 : i32
    %c0_i32_0 = arith.constant 0 : i32
    %c0_i32_1 = arith.constant 0 : i32
    return %c0_i32, %c0_i32_0 : i32, i32
  }
  func.func @transform_5(%arg0: i32) -> (i32, i32) {
    %c0_i32 = arith.constant 0 : i32
    %c0_i32_0 = arith.constant 0 : i32
    %c0_i32_1 = arith.constant 0 : i32
    return %c0_i32, %c0_i32_0 : i32, i32
  }
  func.func @transform_6(%arg0: i32) -> (i32, i32) {
    %c0_i32 = arith.constant 0 : i32
    %c0_i32_0 = arith.constant 0 : i32
    %c0_i32_1 = arith.constant 0 : i32
    return %c0_i32, %c0_i32_0 : i32, i32
  }
  func.func @transform_7(%arg0: i32) -> (i32, i32, i32) {
    %c0_i32 = arith.constant 0 : i32
    %c0_i32_0 = arith.constant 0 : i32
    %c0_i32_1 = arith.constant 0 : i32
    return %arg0, %c0_i32, %c0_i32_0 : i32, i32, i32
  }
}

</mosaic_0001>

<llo_original>
// kernel: tpu_custom_call.1
$region0: #{tpu_custom_call.1}
  #allocation0 [shape = 'u32[]', space=smem, size = 0x4, offset = 0x4, fixed_abs, tag = 'smem constant byte address 0x4 - core index']
  #allocation1 [shape = 'u32[144,128]{1,0:T(1,128)}', space=vmem, size = 0x12000, scoped, tag = 'internal scratch']
  %s0 = inlined_call_operand.vmem [shape: f32[2,16,32], index: 0, kind: input, shape index: {}]
  %s1 = inlined_call_operand.vmem [shape: f32[2,96,32], index: 1, kind: input, shape index: {}]
  %s2 = inlined_call_operand.vmem [shape: f32[2,32], index: 2, kind: input, shape index: {}]
  %s3 = inlined_call_operand.vmem [shape: f32[2,32,32], index: 3, kind: input, shape index: {}]
  %s4 = inlined_call_operand.vmem [shape: f32[2,32], index: 4, kind: input, shape index: {}]
  %s5 = inlined_call_operand.vmem [shape: f32[32,33], index: 5, kind: input, shape index: {}]
  %s6 = inlined_call_operand.vmem [shape: f32[1,33], index: 6, kind: input, shape index: {}]
  %s7 = inlined_call_operand.hbm [shape: f32[2,16,33], index: 7, kind: output, shape index: {}]
  %s8 = sld [smem:[#allocation0]]
  $region38: #{tpu_custom_call.1} parent=0
    _
  %s10 = ssub.s32 1, %s8
  %s11 = scalar_select 0, %s10, %s8
  $region1: #{tpu_custom_call.1} parent=0
    #allocation2 [shape = 'u8[16384]{0}', space=vmem, size = 0x4000, scoped, tag = 'output window, operand 0, single buffered']
    #allocation3 [shape = 's32[1]{0}', space=sflag, size = 0x4, scoped, tag = 'scoped memory for tpu_custom_call.1']
    %12 = vsyncpa [#allocation3], 0
    // Predicated region
    $region2: #{tpu_custom_call.1} parent=1 // pred_check
      _
    $region3: #{tpu_custom_call.1} parent=1 // pred_check_branch
      %14 = sbr.rel (0) target = $region5
    $region4: #{tpu_custom_call.1} parent=1 // pred_region
      _
    $region5: #{tpu_custom_call.1} parent=1 // pred_fallthru
      _
    // Predicated region
    $region6: #{tpu_custom_call.1} parent=1 // pred_check
      _
    $region7: #{tpu_custom_call.1} parent=1 // pred_check_branch
      %16 = sbr.rel (0) target = $region9
    $region8: #{tpu_custom_call.1} parent=1 // pred_region
      _
    $region9: #{tpu_custom_call.1} parent=1 // pred_fallthru
      _
    // Predicated region
    $region10: #{tpu_custom_call.1} parent=1 // pred_check
      _
    $region11: #{tpu_custom_call.1} parent=1 // pred_check_branch
      %18 = sbr.rel (0) target = $region13
    $region12: #{tpu_custom_call.1} parent=1 // pred_region
      _
    $region13: #{tpu_custom_call.1} parent=1 // pred_fallthru
      _
    // Predicated region
    $region14: #{tpu_custom_call.1} parent=1 // pred_check
      _
    $region15: #{tpu_custom_call.1} parent=1 // pred_check_branch
      %20 = sbr.rel (0) target = $region17
    $region16: #{tpu_custom_call.1} parent=1 // pred_region
      _
    $region17: #{tpu_custom_call.1} parent=1 // pred_fallthru
      _
    // Predicated region
    $region18: #{tpu_custom_call.1} parent=1 // pred_check
      _
    $region19: #{tpu_custom_call.1} parent=1 // pred_check_branch
      %22 = sbr.rel (0) target = $region21
    $region20: #{tpu_custom_call.1} parent=1 // pred_region
      _
    $region21: #{tpu_custom_call.1} parent=1 // pred_fallthru
      _
    // Predicated region
    $region22: #{tpu_custom_call.1} parent=1 // pred_check
      _
    $region23: #{tpu_custom_call.1} parent=1 // pred_check_branch
      %24 = sbr.rel (0) target = $region25
    $region24: #{tpu_custom_call.1} parent=1 // pred_region
      _
    $region25: #{tpu_custom_call.1} parent=1 // pred_fallthru
      _
    // Predicated region
    $region26: #{tpu_custom_call.1} parent=1 // pred_check
      _
    $region27: #{tpu_custom_call.1} parent=1 // pred_check_branch
      %26 = sbr.rel (0) target = $region29
    $region28: #{tpu_custom_call.1} parent=1 // pred_region
      _
    $region29: #{tpu_custom_call.1} parent=1 // pred_fallthru
      _
    %v27 = vld [vmem:[%s0] sm:$0xff]
    %v28 = vld [vmem:[%s0 + $0x8] sm:$0xff]
    %v29 = vld [vmem:[%s0 + $0x10] sm:$0xff]
    %v30 = vld [vmem:[%s0 + $0x18] sm:$0xff]
    %vm35 = vcmask 1040384
    %v36 = vrot.slane %v27, 7
    %v37 = vrot.slane %v28, 7
    %v38 = vsel %vm35, %v36, %v37
    %v39 = vrot.slane %v29, 7
    %v40 = vrot.slane %v30, 7
    %v41 = vsel %vm35, %v39, %v40
    %v48 = vsel %vm35, 0.0, %v36
    %v49 = vsel %vm35, 0.0, %v39
    %v50 = vsel %vm35, %v37, 0.0
    %v51 = vsel %vm35, %v40, 0.0
    %vm56 = vcmask 1046528
    %v57 = vrot.slane %v48, 1
    %v58 = vrot.slane %v38, 1
    %v59 = vsel %vm56, %v57, %v58
    %v60 = vrot.slane %v50, 1
    %v61 = vsel %vm56, %v58, %v60
    %v62 = vrot.slane %v49, 1
    %v63 = vrot.slane %v41, 1
    %v64 = vsel %vm56, %v62, %v63
    %v65 = vrot.slane %v51, 1
    %v66 = vsel %vm56, %v63, %v65
    %67 = vrot.lane.b32.xlu0 %v59, 32
    %v68 = vpop.permute.xlu0 %67
    %69 = vrot.lane.b32.xlu0 %v61, 32
    %v70 = vpop.permute.xlu0 %69
    %71 = vrot.lane.b32.xlu0 %v64, 32
    %v72 = vpop.permute.xlu0 %71
    %73 = vrot.lane.b32.xlu0 %v66, 32
    %v74 = vpop.permute.xlu0 %73
    %vm79 = vcmask 1045504
    %v80 = vrot.slane %v48, 2
    %v81 = vrot.slane %v38, 2
    %v82 = vsel %vm79, %v80, %v81
    %v83 = vrot.slane %v50, 2
    %v84 = vsel %vm79, %v81, %v83
    %v85 = vrot.slane %v49, 2
    %v86 = vrot.slane %v41, 2
    %v87 = vsel %vm79, %v85, %v86
    %v88 = vrot.slane %v51, 2
    %v89 = vsel %vm79, %v86, %v88
    %90 = vrot.lane.b32.xlu0 %v82, 64
    %v91 = vpop.permute.xlu0 %90
    %92 = vrot.lane.b32.xlu0 %v84, 64
    %v93 = vpop.permute.xlu0 %92
    %94 = vrot.lane.b32.xlu0 %v87, 64
    %v95 = vpop.permute.xlu0 %94
    %96 = vrot.lane.b32.xlu0 %v89, 64
    %v97 = vpop.permute.xlu0 %96
    %vm102 = vcmask 261120
    %v103 = vsel %vm102, %v48, %v68
    %v104 = vsel %vm102, %v38, %v70
    %v105 = vsel %vm102, %v49, %v72
    %v106 = vsel %vm102, %v41, %v74
    %vm107 = vcmask 523264
    %v108 = vsel %vm107, %v103, %v91
    %v109 = vsel %vm107, %v104, %v93
    %v110 = vsel %vm107, %v105, %v95
    %v111 = vsel %vm107, %v106, %v97
    %v112 = vld [vmem:[%s1] sm:$0xff]
    %v113 = vld [vmem:[%s1 + $0x8] sm:$0xff]
    %v114 = vld [vmem:[%s1 + $0x10] sm:$0xff]
    %v115 = vld [vmem:[%s1 + $0x18] sm:$0xff]
    %v116 = vld [vmem:[%s1 + $0x20] sm:$0xff]
    %v117 = vld [vmem:[%s1 + $0x28] sm:$0xff]
    %v118 = vld [vmem:[%s1 + $0x30] sm:$0xff]
    %v119 = vld [vmem:[%s1 + $0x38] sm:$0xff]
    %v120 = vld [vmem:[%s1 + $0x40] sm:$0xff]
    %v121 = vld [vmem:[%s1 + $0x48] sm:$0xff]
    %v122 = vld [vmem:[%s1 + $0x50] sm:$0xff]
    %v123 = vld [vmem:[%s1 + $0x58] sm:$0xff]
    %v124 = vld [vmem:[%s2] sm:$0x1]
    %v125 = vlaneseq
    %v126 = vshrl.u32 %v125, 7
    %v127 = vsub.s32 0, %v126
    %v128 = vrot.slane %v124, %v127
    %vm129 = vcmask 785408
    %v131 = vsel %vm129, %v108, 0
    %v134 = vsel %vm129, %v109, 0
    %v137 = vsel %vm129, %v110, 0
    %v140 = vsel %vm129, %v111, 0
    %142 = vmatprep.subr.mxu0 0.0
    %143 = vmatpush1.msra.mxu0 0.0
    %144 = vmatprep.subr.mxu0 0.0
    %145 = vmatpush1.msra.mxu0 0.0
    %146 = vmatprep.subr.mxu0 0.0
    %147 = vmatpush1.msra.mxu0 0.0
    %148 = vmatprep.subr.mxu0 0.0
    %149 = vmatpush1.msra.mxu0 0.0
    %150 = vmatprep.subr.mxu0 0.0
    %151 = vmatpush1.msra.mxu0 %v123
    %152 = vmatprep.subr.mxu0 0.0
    %153 = vmatpush1.msra.mxu0 %v122
    %154 = vmatprep.subr.mxu0 0.0
    %155 = vmatpush1.msra.mxu0 %v121
    %156 = vmatprep.subr.mxu0 0.0
    %157 = vmatpush1.msra.mxu0 %v120
    %158 = vmatprep.subr.mxu0 0.0
    %159 = vmatpush1.msra.mxu0 %v119
    %160 = vmatprep.subr.mxu0 0.0
    %161 = vmatpush1.msra.mxu0 %v118
    %162 = vmatprep.subr.mxu0 0.0
    %163 = vmatpush1.msra.mxu0 %v117
    %164 = vmatprep.subr.mxu0 0.0
    %165 = vmatpush1.msra.mxu0 %v116
    %166 = vmatprep.subr.mxu0 0.0
    %167 = vmatpush1.msra.mxu0 %v115
    %168 = vmatprep.subr.mxu0 0.0
    %169 = vmatpush1.msra.mxu0 %v114
    %170 = vmatprep.subr.mxu0 0.0
    %171 = vmatpush1.msra.mxu0 %v113
    %172 = vmatprep.subr.mxu0 0.0
    %173 = vmatpush1.msra.mxu0 %v112
    %174 = vmatprep.subr.mxu0 0.0
    %175 = vmatpush2.msra.mxu0 0.0
    %176 = vmatprep.subr.mxu0 0.0
    %177 = vmatpush2.msra.mxu0 0.0
    %178 = vmatprep.subr.mxu0 0.0
    %179 = vmatpush2.msra.mxu0 0.0
    %180 = vmatprep.subr.mxu0 0.0
    %181 = vmatpush2.msra.mxu0 0.0
    %182 = vmatprep.subr.mxu0 0.0
    %183 = vmatpush2.msra.mxu0 0.0
    %184 = vmatprep.subr.mxu0 0.0
    %185 = vmatpush2.msra.mxu0 0.0
    %186 = vmatprep.subr.mxu0 0.0
    %187 = vmatpush2.msra.mxu0 0.0
    %188 = vmatprep.subr.mxu0 0.0
    %189 = vmatpush2.msra.mxu0 0.0
    %190 = vmatprep.subr.mxu0 0.0
    %191 = vmatpush2.msra.mxu0 0.0
    %192 = vmatprep.subr.mxu0 0.0
    %193 = vmatpush2.msra.mxu0 0.0
    %194 = vmatprep.subr.mxu0 0.0
    %195 = vmatpush2.msra.mxu0 0.0
    %196 = vmatprep.subr.mxu0 0.0
    %197 = vmatpush2.msra.mxu0 0.0
    %198 = vmatprep.subr.mxu0 0.0
    %199 = vmatpush2.msra.mxu0 0.0
    %200 = vmatprep.subr.mxu0 0.0
    %201 = vmatpush2.msra.mxu0 0.0
    %202 = vmatprep.subr.mxu0 0.0
    %203 = vmatpush2.msra.mxu0 0.0
    %204 = vmatprep.subr.mxu0 0.0
    %205 = vmatpush2.msra.mxu0 0.0
    %206 = vmatprep.mubr.f32.mxu0 0.0
    %207 = vmatmul.mubr.f32.gmra.mxu0 %v131
    %v208 = vpop.f32.mrf.mxu0
    %v209 = vadd.f32 %v128, %v208
    %v210 = vpop.f32.mrf.mxu0
    %211 = vmatprep.mubr.f32.mxu0 0.0
    %212 = vmatmul.mubr.f32.gmra.mxu0 %v134
    %v213 = vpop.f32.mrf.mxu0
    %v214 = vadd.f32 %v128, %v213
    %v215 = vpop.f32.mrf.mxu0
    %216 = vmatprep.mubr.f32.mxu0 0.0
    %217 = vmatmul.mubr.f32.gmra.mxu0 %v137
    %v218 = vpop.f32.mrf.mxu0
    %v219 = vadd.f32 %v128, %v218
    %v220 = vpop.f32.mrf.mxu0
    %221 = vmatprep.mubr.f32.mxu0 0.0
    %222 = vmatmul.mubr.f32.gmra.mxu0 %v140
    %v223 = vpop.f32.mrf.mxu0
    %v224 = vadd.f32 %v128, %v223
    %v225 = vpop.f32.mrf.mxu0
    %226 = vdwg.mxu0
    %v227 = vtanh.pop %v209
    %v228 = vtanh.pop %v214
    %v229 = vtanh.pop %v219
    %v230 = vtanh.pop %v224
    %v231 = vld [vmem:[%s3] sm:$0xff]
    %v232 = vld [vmem:[%s3 + $0x8] sm:$0xff]
    %v233 = vld [vmem:[%s3 + $0x10] sm:$0xff]
    %v234 = vld [vmem:[%s3 + $0x18] sm:$0xff]
    %v235 = vld [vmem:[%s4] sm:$0x1]
    %v236 = vlaneseq
    %v237 = vshrl.u32 %v236, 7
    %v238 = vsub.s32 0, %v237
    %v239 = vrot.slane %v235, %v238
    %v241 = vsel %vm102, %v227, 0
    %v244 = vsel %vm102, %v228, 0
    %v247 = vsel %vm102, %v229, 0
    %v250 = vsel %vm102, %v230, 0
    %252 = vmatprep.subr.mxu0 0.0
    %253 = vmatpush1.msra.mxu0 0.0
    %254 = vmatprep.subr.mxu0 0.0
    %255 = vmatpush1.msra.mxu0 0.0
    %256 = vmatprep.subr.mxu0 0.0
    %257 = vmatpush1.msra.mxu0 0.0
    %258 = vmatprep.subr.mxu0 0.0
    %259 = vmatpush1.msra.mxu0 0.0
    %260 = vmatprep.subr.mxu0 0.0
    %261 = vmatpush1.msra.mxu0 0.0
    %262 = vmatprep.subr.mxu0 0.0
    %263 = vmatpush1.msra.mxu0 0.0
    %264 = vmatprep.subr.mxu0 0.0
    %265 = vmatpush1.msra.mxu0 0.0
    %266 = vmatprep.subr.mxu0 0.0
    %267 = vmatpush1.msra.mxu0 0.0
    %268 = vmatprep.subr.mxu0 0.0
    %269 = vmatpush1.msra.mxu0 0.0
    %270 = vmatprep.subr.mxu0 0.0
    %271 = vmatpush1.msra.mxu0 0.0
    %272 = vmatprep.subr.mxu0 0.0
    %273 = vmatpush1.msra.mxu0 0.0
    %274 = vmatprep.subr.mxu0 0.0
    %275 = vmatpush1.msra.mxu0 0.0
    %276 = vmatprep.subr.mxu0 0.0
    %277 = vmatpush1.msra.mxu0 %v234
    %278 = vmatprep.subr.mxu0 0.0
    %279 = vmatpush1.msra.mxu0 %v233
    %280 = vmatprep.subr.mxu0 0.0
    %281 = vmatpush1.msra.mxu0 %v232
    %282 = vmatprep.subr.mxu0 0.0
    %283 = vmatpush1.msra.mxu0 %v231
    %284 = vmatprep.subr.mxu0 0.0
    %285 = vmatpush2.msra.mxu0 0.0
    %286 = vmatprep.subr.mxu0 0.0
    %287 = vmatpush2.msra.mxu0 0.0
    %288 = vmatprep.subr.mxu0 0.0
    %289 = vmatpush2.msra.mxu0 0.0
    %290 = vmatprep.subr.mxu0 0.0
    %291 = vmatpush2.msra.mxu0 0.0
    %292 = vmatprep.subr.mxu0 0.0
    %293 = vmatpush2.msra.mxu0 0.0
    %294 = vmatprep.subr.mxu0 0.0
    %295 = vmatpush2.msra.mxu0 0.0
    %296 = vmatprep.subr.mxu0 0.0
    %297 = vmatpush2.msra.mxu0 0.0
    %298 = vmatprep.subr.mxu0 0.0
    %299 = vmatpush2.msra.mxu0 0.0
    %300 = vmatprep.subr.mxu0 0.0
    %301 = vmatpush2.msra.mxu0 0.0
    %302 = vmatprep.subr.mxu0 0.0
    %303 = vmatpush2.msra.mxu0 0.0
    %304 = vmatprep.subr.mxu0 0.0
    %305 = vmatpush2.msra.mxu0 0.0
    %306 = vmatprep.subr.mxu0 0.0
    %307 = vmatpush2.msra.mxu0 0.0
    %308 = vmatprep.subr.mxu0 0.0
    %309 = vmatpush2.msra.mxu0 0.0
    %310 = vmatprep.subr.mxu0 0.0
    %311 = vmatpush2.msra.mxu0 0.0
    %312 = vmatprep.subr.mxu0 0.0
    %313 = vmatpush2.msra.mxu0 0.0
    %314 = vmatprep.subr.mxu0 0.0
    %315 = vmatpush2.msra.mxu0 0.0
    %316 = vmatprep.mubr.f32.mxu0 0.0
    %317 = vmatmul.mubr.f32.gmra.mxu0 %v241
    %v318 = vpop.f32.mrf.mxu0
    %v319 = vadd.f32 %v239, %v318
    %v320 = vpop.f32.mrf.mxu0
    %321 = vmatprep.mubr.f32.mxu0 0.0
    %322 = vmatmul.mubr.f32.gmra.mxu0 %v244
    %v323 = vpop.f32.mrf.mxu0
    %v324 = vadd.f32 %v239, %v323
    %v325 = vpop.f32.mrf.mxu0
    %326 = vmatprep.mubr.f32.mxu0 0.0
    %327 = vmatmul.mubr.f32.gmra.mxu0 %v247
    %v328 = vpop.f32.mrf.mxu0
    %v329 = vadd.f32 %v239, %v328
    %v330 = vpop.f32.mrf.mxu0
    %331 = vmatprep.mubr.f32.mxu0 0.0
    %332 = vmatmul.mubr.f32.gmra.mxu0 %v250
    %v333 = vpop.f32.mrf.mxu0
    %v334 = vadd.f32 %v239, %v333
    %v335 = vpop.f32.mrf.mxu0
    %336 = vdwg.mxu0
    %v337 = vxor.u32 %v319, 2147483648
    %v338 = vxor.u32 %v324, 2147483648
    %v339 = vxor.u32 %v329, 2147483648
    %v340 = vxor.u32 %v334, 2147483648
    %v341 = vmul.f32 %v337, 1.442695
    %v342 = vpow.pop %v341
    %v343 = vmul.f32 %v338, 1.442695
    %v344 = vpow.pop %v343
    %v345 = vmul.f32 %v339, 1.442695
    %v346 = vpow.pop %v345
    %v347 = vmul.f32 %v340, 1.442695
    %v348 = vpow.pop %v347
    %v349 = vadd.f32 %v342, 1.0
    %v350 = vadd.f32 %v344, 1.0
    %v351 = vadd.f32 %v346, 1.0
    %v352 = vadd.f32 %v348, 1.0
    %v353 = vrcp.pop %v349
    %v354 = vmul.f32 1.0, %v353
    %v355 = vrcp.pop %v350
    %v356 = vmul.f32 1.0, %v355
    %v357 = vrcp.pop %v351
    %v358 = vmul.f32 1.0, %v357
    %v359 = vrcp.pop %v352
    %v360 = vmul.f32 1.0, %v359
    %v361 = vmul.f32 %v354, %v227
    %v362 = vmul.f32 %v356, %v228
    %v363 = vmul.f32 %v358, %v229
    %v364 = vmul.f32 %v360, %v230
    %v365 = vsub.f32 1.0, %v354
    %v366 = vsub.f32 1.0, %v356
    %v367 = vsub.f32 1.0, %v358
    %v368 = vsub.f32 1.0, %v360
    %v369 = vmul.f32 %v365, %v27
    %v370 = vmul.f32 %v366, %v28
    %v371 = vmul.f32 %v367, %v29
    %v372 = vmul.f32 %v368, %v30
    %v373 = vadd.f32 %v361, %v369
    %v374 = vadd.f32 %v362, %v370
    %v375 = vadd.f32 %v363, %v371
    %v376 = vadd.f32 %v364, %v372
    %v381 = vrot.slane %v373, 7
    %v382 = vrot.slane %v374, 7
    %v383 = vsel %vm35, %v381, %v382
    %v384 = vrot.slane %v375, 7
    %v385 = vrot.slane %v376, 7
    %v386 = vsel %vm35, %v384, %v385
    %v393 = vsel %vm35, 0.0, %v381
    %v394 = vsel %vm35, 0.0, %v384
    %v395 = vsel %vm35, %v382, 0.0
    %v396 = vsel %vm35, %v385, 0.0
    %v401 = vrot.slane %v393, 1
    %v402 = vrot.slane %v383, 1
    %v403 = vsel %vm56, %v401, %v402
    %v404 = vrot.slane %v395, 1
    %v405 = vsel %vm56, %v402, %v404
    %v406 = vrot.slane %v394, 1
    %v407 = vrot.slane %v386, 1
    %v408 = vsel %vm56, %v406, %v407
    %v409 = vrot.slane %v396, 1
    %v410 = vsel %vm56, %v407, %v409
    %411 = vrot.lane.b32.xlu0 %v403, 32
    %v412 = vpop.permute.xlu0 %411
    %413 = vrot.lane.b32.xlu0 %v405, 32
    %v414 = vpop.permute.xlu0 %413
    %415 = vrot.lane.b32.xlu0 %v408, 32
    %v416 = vpop.permute.xlu0 %415
    %417 = vrot.lane.b32.xlu0 %v410, 32
    %v418 = vpop.permute.xlu0 %417
    %v423 = vrot.slane %v393, 2
    %v424 = vrot.slane %v383, 2
    %v425 = vsel %vm79, %v423, %v424
    %v426 = vrot.slane %v395, 2
    %v427 = vsel %vm79, %v424, %v426
    %v428 = vrot.slane %v394, 2
    %v429 = vrot.slane %v386, 2
    %v430 = vsel %vm79, %v428, %v429
    %v431 = vrot.slane %v396, 2
    %v432 = vsel %vm79, %v429, %v431
    %433 = vrot.lane.b32.xlu0 %v425, 64
    %v434 = vpop.permute.xlu0 %433
    %435 = vrot.lane.b32.xlu0 %v427, 64
    %v436 = vpop.permute.xlu0 %435
    %437 = vrot.lane.b32.xlu0 %v430, 64
    %v438 = vpop.permute.xlu0 %437
    %439 = vrot.lane.b32.xlu0 %v432, 64
    %v440 = vpop.permute.xlu0 %439
    %v445 = vsel %vm102, %v393, %v412
    %v446 = vsel %vm102, %v383, %v414
    %v447 = vsel %vm102, %v394, %v416
    %v448 = vsel %vm102, %v386, %v418
    %v449 = vsel %vm107, %v445, %v434
    %v450 = vsel %vm107, %v446, %v436
    %v451 = vsel %vm107, %v447, %v438
    %v452 = vsel %vm107, %v448, %v440
    %s453 = scalar_lea.vmem %s1, 96
    %v454 = vld [vmem:[%s453] sm:$0xff]
    %v455 = vld [vmem:[%s453 + $0x8] sm:$0xff]
    %v456 = vld [vmem:[%s453 + $0x10] sm:$0xff]
    %v457 = vld [vmem:[%s453 + $0x18] sm:$0xff]
    %v458 = vld [vmem:[%s453 + $0x20] sm:$0xff]
    %v459 = vld [vmem:[%s453 + $0x28] sm:$0xff]
    %v460 = vld [vmem:[%s453 + $0x30] sm:$0xff]
    %v461 = vld [vmem:[%s453 + $0x38] sm:$0xff]
    %v462 = vld [vmem:[%s453 + $0x40] sm:$0xff]
    %v463 = vld [vmem:[%s453 + $0x48] sm:$0xff]
    %v464 = vld [vmem:[%s453 + $0x50] sm:$0xff]
    %v465 = vld [vmem:[%s453 + $0x58] sm:$0xff]
    %v466 = vld [vmem:[%s2 + $0x1] sm:$0x1]
    %v467 = vlaneseq
    %v468 = vshrl.u32 %v467, 7
    %v469 = vsub.s32 0, %v468
    %v470 = vrot.slane %v466, %v469
    %v472 = vsel %vm129, %v449, 0
    %v475 = vsel %vm129, %v450, 0
    %v478 = vsel %vm129, %v451, 0
    %v481 = vsel %vm129, %v452, 0
    %483 = vmatprep.subr.mxu0 0.0
    %484 = vmatpush1.msra.mxu0 0.0
    %485 = vmatprep.subr.mxu0 0.0
    %486 = vmatpush1.msra.mxu0 0.0
    %487 = vmatprep.subr.mxu0 0.0
    %488 = vmatpush1.msra.mxu0 0.0
    %489 = vmatprep.subr.mxu0 0.0
    %490 = vmatpush1.msra.mxu0 0.0
    %491 = vmatprep.subr.mxu0 0.0
    %492 = vmatpush1.msra.mxu0 %v465
    %493 = vmatprep.subr.mxu0 0.0
    %494 = vmatpush1.msra.mxu0 %v464
    %495 = vmatprep.subr.mxu0 0.0
    %496 = vmatpush1.msra.mxu0 %v463
    %497 = vmatprep.subr.mxu0 0.0
    %498 = vmatpush1.msra.mxu0 %v462
    %499 = vmatprep.subr.mxu0 0.0
    %500 = vmatpush1.msra.mxu0 %v461
    %501 = vmatprep.subr.mxu0 0.0
    %502 = vmatpush1.msra.mxu0 %v460
    %503 = vmatprep.subr.mxu0 0.0
    %504 = vmatpush1.msra.mxu0 %v459
    %505 = vmatprep.subr.mxu0 0.0
    %506 = vmatpush1.msra.mxu0 %v458
    %507 = vmatprep.subr.mxu0 0.0
    %508 = vmatpush1.msra.mxu0 %v457
    %509 = vmatprep.subr.mxu0 0.0
    %510 = vmatpush1.msra.mxu0 %v456
    %511 = vmatprep.subr.mxu0 0.0
    %512 = vmatpush1.msra.mxu0 %v455
    %513 = vmatprep.subr.mxu0 0.0
    %514 = vmatpush1.msra.mxu0 %v454
    %515 = vmatprep.subr.mxu0 0.0
    %516 = vmatpush2.msra.mxu0 0.0
    %517 = vmatprep.subr.mxu0 0.0
    %518 = vmatpush2.msra.mxu0 0.0
    %519 = vmatprep.subr.mxu0 0.0
    %520 = vmatpush2.msra.mxu0 0.0
    %521 = vmatprep.subr.mxu0 0.0
    %522 = vmatpush2.msra.mxu0 0.0
    %523 = vmatprep.subr.mxu0 0.0
    %524 = vmatpush2.msra.mxu0 0.0
    %525 = vmatprep.subr.mxu0 0.0
    %526 = vmatpush2.msra.mxu0 0.0
    %527 = vmatprep.subr.mxu0 0.0
    %528 = vmatpush2.msra.mxu0 0.0
    %529 = vmatprep.subr.mxu0 0.0
    %530 = vmatpush2.msra.mxu0 0.0
    %531 = vmatprep.subr.mxu0 0.0
    %532 = vmatpush2.msra.mxu0 0.0
    %533 = vmatprep.subr.mxu0 0.0
    %534 = vmatpush2.msra.mxu0 0.0
    %535 = vmatprep.subr.mxu0 0.0
    %536 = vmatpush2.msra.mxu0 0.0
    %537 = vmatprep.subr.mxu0 0.0
    %538 = vmatpush2.msra.mxu0 0.0
    %539 = vmatprep.subr.mxu0 0.0
    %540 = vmatpush2.msra.mxu0 0.0
    %541 = vmatprep.subr.mxu0 0.0
    %542 = vmatpush2.msra.mxu0 0.0
    %543 = vmatprep.subr.mxu0 0.0
    %544 = vmatpush2.msra.mxu0 0.0
    %545 = vmatprep.subr.mxu0 0.0
    %546 = vmatpush2.msra.mxu0 0.0
    %547 = vmatprep.mubr.f32.mxu0 0.0
    %548 = vmatmul.mubr.f32.gmra.mxu0 %v472
    %v549 = vpop.f32.mrf.mxu0
    %v550 = vadd.f32 %v470, %v549
    %v551 = vpop.f32.mrf.mxu0
    %552 = vmatprep.mubr.f32.mxu0 0.0
    %553 = vmatmul.mubr.f32.gmra.mxu0 %v475
    %v554 = vpop.f32.mrf.mxu0
    %v555 = vadd.f32 %v470, %v554
    %v556 = vpop.f32.mrf.mxu0
    %557 = vmatprep.mubr.f32.mxu0 0.0
    %558 = vmatmul.mubr.f32.gmra.mxu0 %v478
    %v559 = vpop.f32.mrf.mxu0
    %v560 = vadd.f32 %v470, %v559
    %v561 = vpop.f32.mrf.mxu0
    %562 = vmatprep.mubr.f32.mxu0 0.0
    %563 = vmatmul.mubr.f32.gmra.mxu0 %v481
    %v564 = vpop.f32.mrf.mxu0
    %v565 = vadd.f32 %v470, %v564
    %v566 = vpop.f32.mrf.mxu0
    %567 = vdwg.mxu0
    %v568 = vtanh.pop %v550
    %v569 = vtanh.pop %v555
    %v570 = vtanh.pop %v560
    %v571 = vtanh.pop %v565
    %s572 = scalar_lea.vmem %s3, 32
    %v573 = vld [vmem:[%s572] sm:$0xff]
    %v574 = vld [vmem:[%s572 + $0x8] sm:$0xff]
    %v575 = vld [vmem:[%s572 + $0x10] sm:$0xff]
    %v576 = vld [vmem:[%s572 + $0x18] sm:$0xff]
    %v577 = vld [vmem:[%s4 + $0x1] sm:$0x1]
    %v578 = vlaneseq
    %v579 = vshrl.u32 %v578, 7
    %v580 = vsub.s32 0, %v579
    %v581 = vrot.slane %v577, %v580
    %v583 = vsel %vm102, %v568, 0
    %v586 = vsel %vm102, %v569, 0
    %v589 = vsel %vm102, %v570, 0
    %v592 = vsel %vm102, %v571, 0
    %594 = vmatprep.subr.mxu0 0.0
    %595 = vmatpush1.msra.mxu0 0.0
    %596 = vmatprep.subr.mxu0 0.0
    %597 = vmatpush1.msra.mxu0 0.0
    %598 = vmatprep.subr.mxu0 0.0
    %599 = vmatpush1.msra.mxu0 0.0
    %600 = vmatprep.subr.mxu0 0.0
    %601 = vmatpush1.msra.mxu0 0.0
    %602 = vmatprep.subr.mxu0 0.0
    %603 = vmatpush1.msra.mxu0 0.0
    %604 = vmatprep.subr.mxu0 0.0
    %605 = vmatpush1.msra.mxu0 0.0
    %606 = vmatprep.subr.mxu0 0.0
    %607 = vmatpush1.msra.mxu0 0.0
    %608 = vmatprep.subr.mxu0 0.0
    %609 = vmatpush1.msra.mxu0 0.0
    %610 = vmatprep.subr.mxu0 0.0
    %611 = vmatpush1.msra.mxu0 0.0
    %612 = vmatprep.subr.mxu0 0.0
    %613 = vmatpush1.msra.mxu0 0.0
    %614 = vmatprep.subr.mxu0 0.0
    %615 = vmatpush1.msra.mxu0 0.0
    %616 = vmatprep.subr.mxu0 0.0
    %617 = vmatpush1.msra.mxu0 0.0
    %618 = vmatprep.subr.mxu0 0.0
    %619 = vmatpush1.msra.mxu0 %v576
    %620 = vmatprep.subr.mxu0 0.0
    %621 = vmatpush1.msra.mxu0 %v575
    %622 = vmatprep.subr.mxu0 0.0
    %623 = vmatpush1.msra.mxu0 %v574
    %624 = vmatprep.subr.mxu0 0.0
    %625 = vmatpush1.msra.mxu0 %v573
    %626 = vmatprep.subr.mxu0 0.0
    %627 = vmatpush2.msra.mxu0 0.0
    %628 = vmatprep.subr.mxu0 0.0
    %629 = vmatpush2.msra.mxu0 0.0
    %630 = vmatprep.subr.mxu0 0.0
    %631 = vmatpush2.msra.mxu0 0.0
    %632 = vmatprep.subr.mxu0 0.0
    %633 = vmatpush2.msra.mxu0 0.0
    %634 = vmatprep.subr.mxu0 0.0
    %635 = vmatpush2.msra.mxu0 0.0
    %636 = vmatprep.subr.mxu0 0.0
    %637 = vmatpush2.msra.mxu0 0.0
    %638 = vmatprep.subr.mxu0 0.0
    %639 = vmatpush2.msra.mxu0 0.0
    %640 = vmatprep.subr.mxu0 0.0
    %641 = vmatpush2.msra.mxu0 0.0
    %642 = vmatprep.subr.mxu0 0.0
    %643 = vmatpush2.msra.mxu0 0.0
    %644 = vmatprep.subr.mxu0 0.0
    %645 = vmatpush2.msra.mxu0 0.0
    %646 = vmatprep.subr.mxu0 0.0
    %647 = vmatpush2.msra.mxu0 0.0
    %648 = vmatprep.subr.mxu0 0.0
    %649 = vmatpush2.msra.mxu0 0.0
    %650 = vmatprep.subr.mxu0 0.0
    %651 = vmatpush2.msra.mxu0 0.0
    %652 = vmatprep.subr.mxu0 0.0
    %653 = vmatpush2.msra.mxu0 0.0
    %654 = vmatprep.subr.mxu0 0.0
    %655 = vmatpush2.msra.mxu0 0.0
    %656 = vmatprep.subr.mxu0 0.0
    %657 = vmatpush2.msra.mxu0 0.0
    %658 = vmatprep.mubr.f32.mxu0 0.0
    %659 = vmatmul.mubr.f32.gmra.mxu0 %v583
    %v660 = vpop.f32.mrf.mxu0
    %v661 = vadd.f32 %v581, %v660
    %v662 = vpop.f32.mrf.mxu0
    %663 = vmatprep.mubr.f32.mxu0 0.0
    %664 = vmatmul.mubr.f32.gmra.mxu0 %v586
    %v665 = vpop.f32.mrf.mxu0
    %v666 = vadd.f32 %v581, %v665
    %v667 = vpop.f32.mrf.mxu0
    %668 = vmatprep.mubr.f32.mxu0 0.0
    %669 = vmatmul.mubr.f32.gmra.mxu0 %v589
    %v670 = vpop.f32.mrf.mxu0
    %v671 = vadd.f32 %v581, %v670
    %v672 = vpop.f32.mrf.mxu0
    %673 = vmatprep.mubr.f32.mxu0 0.0
    %674 = vmatmul.mubr.f32.gmra.mxu0 %v592
    %v675 = vpop.f32.mrf.mxu0
    %v676 = vadd.f32 %v581, %v675
    %v677 = vpop.f32.mrf.mxu0
    %678 = vdwg.mxu0
    %v679 = vxor.u32 %v661, 2147483648
    %v680 = vxor.u32 %v666, 2147483648
    %v681 = vxor.u32 %v671, 2147483648
    %v682 = vxor.u32 %v676, 2147483648
    %v683 = vmul.f32 %v679, 1.442695
    %v684 = vpow.pop %v683
    %v685 = vmul.f32 %v680, 1.442695
    %v686 = vpow.pop %v685
    %v687 = vmul.f32 %v681, 1.442695
    %v688 = vpow.pop %v687
    %v689 = vmul.f32 %v682, 1.442695
    %v690 = vpow.pop %v689
    %v691 = vadd.f32 %v684, 1.0
    %v692 = vadd.f32 %v686, 1.0
    %v693 = vadd.f32 %v688, 1.0
    %v694 = vadd.f32 %v690, 1.0
    %v695 = vrcp.pop %v691
    %v696 = vmul.f32 1.0, %v695
    %v697 = vrcp.pop %v692
    %v698 = vmul.f32 1.0, %v697
    %v699 = vrcp.pop %v693
    %v700 = vmul.f32 1.0, %v699
    %v701 = vrcp.pop %v694
    %v702 = vmul.f32 1.0, %v701
    %v703 = vmul.f32 %v696, %v568
    %v704 = vmul.f32 %v698, %v569
    %v705 = vmul.f32 %v700, %v570
    %v706 = vmul.f32 %v702, %v571
    %v707 = vsub.f32 1.0, %v696
    %v708 = vsub.f32 1.0, %v698
    %v709 = vsub.f32 1.0, %v700
    %v710 = vsub.f32 1.0, %v702
    %v711 = vmul.f32 %v707, %v373
    %v712 = vmul.f32 %v708, %v374
    %v713 = vmul.f32 %v709, %v375
    %v714 = vmul.f32 %v710, %v376
    %v715 = vadd.f32 %v703, %v711
    %v716 = vadd.f32 %v704, %v712
    %v717 = vadd.f32 %v705, %v713
    %v718 = vadd.f32 %v706, %v714
    %v719 = vld [vmem:[%s5] sm:$0xff]
    %v720 = vld [vmem:[%s5 + $0x8] sm:$0xff]
    %v721 = vld [vmem:[%s5 + $0x10] sm:$0xff]
    %v722 = vld [vmem:[%s5 + $0x18] sm:$0xff]
    %v723 = vld [vmem:[%s6] sm:$0x1]
    %v725 = vlaneseq
    %v726 = vshrl.u32 %v725, 7
    %v727 = vsub.s32 0, %v726
    %v728 = vrot.slane %v723, %v727
    %v731 = vsel %vm102, %v715, 0
    %v734 = vsel %vm102, %v716, 0
    %v737 = vsel %vm102, %v717, 0
    %v740 = vsel %vm102, %v718, 0
    %742 = vmatprep.subr.mxu0 0.0
    %743 = vmatpush1.msra.mxu0 0.0
    %744 = vmatprep.subr.mxu0 0.0
    %745 = vmatpush1.msra.mxu0 0.0
    %746 = vmatprep.subr.mxu0 0.0
    %747 = vmatpush1.msra.mxu0 0.0
    %748 = vmatprep.subr.mxu0 0.0
    %749 = vmatpush1.msra.mxu0 0.0
    %750 = vmatprep.subr.mxu0 0.0
    %751 = vmatpush1.msra.mxu0 0.0
    %752 = vmatprep.subr.mxu0 0.0
    %753 = vmatpush1.msra.mxu0 0.0
    %754 = vmatprep.subr.mxu0 0.0
    %755 = vmatpush1.msra.mxu0 0.0
    %756 = vmatprep.subr.mxu0 0.0
    %757 = vmatpush1.msra.mxu0 0.0
    %758 = vmatprep.subr.mxu0 0.0
    %759 = vmatpush1.msra.mxu0 0.0
    %760 = vmatprep.subr.mxu0 0.0
    %761 = vmatpush1.msra.mxu0 0.0
    %762 = vmatprep.subr.mxu0 0.0
    %763 = vmatpush1.msra.mxu0 0.0
    %764 = vmatprep.subr.mxu0 0.0
    %765 = vmatpush1.msra.mxu0 0.0
    %766 = vmatprep.subr.mxu0 0.0
    %767 = vmatpush1.msra.mxu0 %v722
    %768 = vmatprep.subr.mxu0 0.0
    %769 = vmatpush1.msra.mxu0 %v721
    %770 = vmatprep.subr.mxu0 0.0
    %771 = vmatpush1.msra.mxu0 %v720
    %772 = vmatprep.subr.mxu0 0.0
    %773 = vmatpush1.msra.mxu0 %v719
    %774 = vmatprep.subr.mxu0 0.0
    %775 = vmatpush2.msra.mxu0 0.0
    %776 = vmatprep.subr.mxu0 0.0
    %777 = vmatpush2.msra.mxu0 0.0
    %778 = vmatprep.subr.mxu0 0.0
    %779 = vmatpush2.msra.mxu0 0.0
    %780 = vmatprep.subr.mxu0 0.0
    %781 = vmatpush2.msra.mxu0 0.0
    %782 = vmatprep.subr.mxu0 0.0
    %783 = vmatpush2.msra.mxu0 0.0
    %784 = vmatprep.subr.mxu0 0.0
    %785 = vmatpush2.msra.mxu0 0.0
    %786 = vmatprep.subr.mxu0 0.0
    %787 = vmatpush2.msra.mxu0 0.0
    %788 = vmatprep.subr.mxu0 0.0
    %789 = vmatpush2.msra.mxu0 0.0
    %790 = vmatprep.subr.mxu0 0.0
    %791 = vmatpush2.msra.mxu0 0.0
    %792 = vmatprep.subr.mxu0 0.0
    %793 = vmatpush2.msra.mxu0 0.0
    %794 = vmatprep.subr.mxu0 0.0
    %795 = vmatpush2.msra.mxu0 0.0
    %796 = vmatprep.subr.mxu0 0.0
    %797 = vmatpush2.msra.mxu0 0.0
    %798 = vmatprep.subr.mxu0 0.0
    %799 = vmatpush2.msra.mxu0 0.0
    %800 = vmatprep.subr.mxu0 0.0
    %801 = vmatpush2.msra.mxu0 0.0
    %802 = vmatprep.subr.mxu0 0.0
    %803 = vmatpush2.msra.mxu0 0.0
    %804 = vmatprep.subr.mxu0 0.0
    %805 = vmatpush2.msra.mxu0 0.0
    %806 = vmatprep.mubr.f32.mxu0 0.0
    %807 = vmatmul.mubr.f32.gmra.mxu0 %v731
    %v808 = vpop.f32.mrf.mxu0
    %v809 = vadd.f32 %v728, %v808
    %v810 = vpop.f32.mrf.mxu0
    %811 = vmatprep.mubr.f32.mxu0 0.0
    %812 = vmatmul.mubr.f32.gmra.mxu0 %v734
    %v813 = vpop.f32.mrf.mxu0
    %v814 = vadd.f32 %v728, %v813
    %v815 = vpop.f32.mrf.mxu0
    %816 = vmatprep.mubr.f32.mxu0 0.0
    %817 = vmatmul.mubr.f32.gmra.mxu0 %v737
    %v818 = vpop.f32.mrf.mxu0
    %v819 = vadd.f32 %v728, %v818
    %v820 = vpop.f32.mrf.mxu0
    %821 = vmatprep.mubr.f32.mxu0 0.0
    %822 = vmatmul.mubr.f32.gmra.mxu0 %v740
    %v823 = vpop.f32.mrf.mxu0
    %v824 = vadd.f32 %v728, %v823
    %v825 = vpop.f32.mrf.mxu0
    %826 = vdwg.mxu0
    %v827 = vlaneseq
    %v828 = vand.u32 %v827, 127
    %vm829 = vcmp.lt.s32.totalorder %v828, 32
    %v830 = vtanh.pop %v809
    %v831 = vtanh.pop %v814
    %v832 = vtanh.pop %v819
    %v833 = vtanh.pop %v824
    %v834 = vxor.u32 %v809, 2147483648
    %v835 = vxor.u32 %v814, 2147483648
    %v836 = vxor.u32 %v819, 2147483648
    %v837 = vxor.u32 %v824, 2147483648
    %v838 = vmul.f32 %v834, 1.442695
    %v839 = vpow.pop %v838
    %v840 = vmul.f32 %v835, 1.442695
    %v841 = vpow.pop %v840
    %v842 = vmul.f32 %v836, 1.442695
    %v843 = vpow.pop %v842
    %v844 = vmul.f32 %v837, 1.442695
    %v845 = vpow.pop %v844
    %v846 = vadd.f32 %v839, 1.0
    %v847 = vadd.f32 %v841, 1.0
    %v848 = vadd.f32 %v843, 1.0
    %v849 = vadd.f32 %v845, 1.0
    %v850 = vrcp.pop %v846
    %v851 = vmul.f32 1.0, %v850
    %v852 = vrcp.pop %v847
    %v853 = vmul.f32 1.0, %v852
    %v854 = vrcp.pop %v848
    %v855 = vmul.f32 1.0, %v854
    %v856 = vrcp.pop %v849
    %v857 = vmul.f32 1.0, %v856
    %v858 = vsel %vm829, %v830, %v851
    %v859 = vsel %vm829, %v831, %v853
    %v860 = vsel %vm829, %v832, %v855
    %v861 = vsel %vm829, %v833, %v857
    %vm862 = vcmask 269312
    %863 = vst.msk [vmem:[#allocation2] sm:$0xff] %vm862, %v858
    %864 = vst.msk [vmem:[#allocation2 + $0x8] sm:$0xff] %vm862, %v859
    %865 = vst.msk [vmem:[#allocation2 + $0x10] sm:$0xff] %vm862, %v860
    %866 = vst.msk [vmem:[#allocation2 + $0x18] sm:$0xff] %vm862, %v861
    // Predicated region
    $region30: #{tpu_custom_call.1} parent=1 // pred_check
      _
    $region31: #{tpu_custom_call.1} parent=1 // pred_check_branch
      %868 = sbr.rel (0) target = $region33
    $region32: #{tpu_custom_call.1} parent=1 // pred_region
      %s870 = ssub.s32 512, 512
      %871 = vsyncadd [#allocation3], %s870
      %s872 = sshll.u32 [#allocation2], 4
      %s873 = int_to_ptr.vmem [resolvable:$true] %s872
      %878 = dma.vmem_to_hbm [thread:$0]  %s873, 512, %s7, [#allocation3], 128, 128, 8
    $region33: #{tpu_custom_call.1} parent=1 // pred_fallthru
      _
    // Predicated region
    $region34: #{tpu_custom_call.1} parent=1 // pred_check
      _
    $region35: #{tpu_custom_call.1} parent=1 // pred_check_branch
      %880 = sbr.rel (0) target = $region37
    $region36: #{tpu_custom_call.1} parent=1 // pred_region
      %881 = dma.done [#allocation3], 512
    $region37: #{tpu_custom_call.1} parent=1 // pred_fallthru
      _
    %882 = vsyncpa [#allocation3], 1

</llo_original>
